<compile_context>
chip_gen: v5e
topology: v5e:2x2
jax: 0.10.0
libtpu: 0.0.40
codegen_flags: <defaults>
</compile_context>

<pallas_src>
import jax
import jax.numpy as jnp
from jax.experimental import pallas as pl
from jax.experimental.pallas import tpu as pltpu

INPUT_SIZE = 34  # fixed by the module: nn.LSTM(34, hidden_size)


def lstm_decoder_kernel(x_ref, w_ih_ref, w_hh_ref, b_ref, w_dec_ref, b_dec_ref,
                        out_ref, xp_scr):
    # Static shapes:
    #   x_ref    : (1, T*BT, F)  time-major rows; BT batch rows contiguous per t
    #   w_ih_ref : (F, 4H) f32, gate columns [i|f|o|g]
    #   w_hh_ref : (H, 4H) bf16, gate columns [i|f|o|g]
    #   b_ref    : (1, 4H) f32, b_ih + b_hh (permuted)
    #   w_dec_ref: (H, C) f32,  b_dec_ref: (1, C) f32
    #   out_ref  : (1, BT, C)
    #   xp_scr   : (T*BT, 4H) f32 scratch (time-major)
    _, BT, _ = out_ref.shape
    TB = x_ref.shape[1]
    T = TB // BT
    H = w_hh_ref.shape[0]

    # ---- Phase 1: hoisted input projection, one MXU matmul + one store ------
    xp_scr[...] = (
        jnp.dot(x_ref[0], w_ih_ref[...], preferred_element_type=jnp.float32)
        + b_ref[...])

    # ---- Phase 2: serial LSTM recurrence, one bf16 MXU push per step --------
    w_hh = w_hh_ref[...]                                   # (H, 4H) bf16, hoisted
    h = jnp.zeros((BT, H), jnp.float32)
    c = jnp.zeros((BT, H), jnp.float32)
    for t in range(T):  # static T (=8) -> fully unrolled at trace time
        gates = xp_scr[t * BT:(t + 1) * BT, :] + jnp.dot(
            h.astype(jnp.bfloat16), w_hh, preferred_element_type=jnp.float32)
        sig = jax.nn.sigmoid(gates[:, :3 * H])             # [i | f | o] in one EUP region
        g_g = jnp.tanh(gates[:, 3 * H:])                   # [g]
        c = sig[:, H:2 * H] * c + sig[:, :H] * g_g
        h = sig[:, 2 * H:3 * H] * jnp.tanh(c)

    # ---- Phase 3: decoder on the final hidden state --------------------------
    decoded = (jnp.dot(h, w_dec_ref[...], preferred_element_type=jnp.float32)
               + b_dec_ref[...])
    out_ref[0] = decoded.astype(out_ref.dtype)


def simple_audio_rnn_forward(x_btf, params, *, hidden_size, num_classes):
    """x_btf: (B, T, F=34) float32, PyTorch batch_first LSTM input layout."""
    B, T, F = x_btf.shape
    assert F == INPUT_SIZE
    H = hidden_size
    C = num_classes

    # v7x has 2 TensorCores: shard independent per-batch recurrences across
    # them via a "parallel" leading grid axis.  Only split when each tile keeps
    # full 8-row sublanes; at small B the split would just serialize the
    # recurrence on 1-TC chips (v5e/v6e) and waste sublanes.
    NB = 2 if (B % 2 == 0 and (B // 2) % 8 == 0) else 1
    BT = B // NB

    # Permute gate columns from PyTorch [i|f|g|o] to [i|f|o|g] so the kernel's
    # sigmoid covers one contiguous 3H region and tanh the trailing H lanes.
    def perm(m):
        i, f, g, o = jnp.split(m, 4, axis=-1)
        return jnp.concatenate([i, f, o, g], axis=-1)

    w_ih_t = perm(params["w_ih"].T)                                   # (F, 4H) f32
    w_hh_t = perm(params["w_hh"].T).astype(jnp.bfloat16)              # (H, 4H) bf16
    bias = perm((params["b_ih"] + params["b_hh"]).reshape(1, 4 * H))  # (1, 4H) f32
    w_dec_t = params["w_dec"].T                                       # (H, C)
    b_dec = params["b_dec"].reshape(1, C)                             # (1, C)

    # Time-major, batch-tiled input: tile nb, row (t*BT + j) holds
    # x[nb*BT + j, t, :].  Makes the Phase-2 per-step read contiguous.
    x_tiles = (jnp.transpose(x_btf, (1, 0, 2))        # (T, B, F)
               .reshape(T, NB, BT, F)
               .transpose(1, 0, 2, 3)
               .reshape(NB, T * BT, F))

    full2 = lambda nb: (0, 0)
    out3 = pl.pallas_call(
        lstm_decoder_kernel,
        out_shape=jax.ShapeDtypeStruct((NB, BT, C), jnp.float32),
        grid_spec=pltpu.PrefetchScalarGridSpec(
            num_scalar_prefetch=0,
            grid=(NB,),
            in_specs=[
                pl.BlockSpec((1, T * BT, F), lambda nb: (nb, 0, 0)),  # x tile
                pl.BlockSpec((F, 4 * H), full2),                      # W_ih^T
                pl.BlockSpec((H, 4 * H), full2),                      # W_hh^T (bf16)
                pl.BlockSpec((1, 4 * H), full2),                      # b_ih + b_hh
                pl.BlockSpec((H, C), full2),                          # W_dec^T
                pl.BlockSpec((1, C), full2),                          # b_dec
            ],
            out_specs=pl.BlockSpec((1, BT, C), lambda nb: (nb, 0, 0)),
            scratch_shapes=[
                pltpu.VMEM((T * BT, 4 * H), jnp.float32),             # time-major xp
            ],
        ),
        compiler_params=pltpu.CompilerParams(
            dimension_semantics=("parallel",),
        ),
    )(x_tiles, w_ih_t, w_hh_t, bias, w_dec_t, b_dec)
    return out3.reshape(B, C)


def reference_forward(x_btf, params):
    """Pure-JAX f32 reference of the PyTorch forward (correctness check)."""
    B, T, F = x_btf.shape
    H = params["w_hh"].shape[1]

    def step(carry, x_t):
        h, c = carry
        gates = (x_t @ params["w_ih"].T + params["b_ih"]
                 + h @ params["w_hh"].T + params["b_hh"])
        i = jax.nn.sigmoid(gates[:, 0 * H:1 * H])
        f = jax.nn.sigmoid(gates[:, 1 * H:2 * H])
        g = jnp.tanh(gates[:, 2 * H:3 * H])
        o = jax.nn.sigmoid(gates[:, 3 * H:4 * H])
        c = f * c + i * g
        h = o * jnp.tanh(c)
        return (h, c), None

    h0 = jnp.zeros((B, H), jnp.float32)
    (h, _), _ = jax.lax.scan(step, (h0, h0), jnp.transpose(x_btf, (1, 0, 2)))
    return h @ params["w_dec"].T + params["b_dec"]


def init_params(key, hidden_size, num_classes):
    # Deterministic synthetic init (uniform(-1/sqrt(H), 1/sqrt(H)), like PyTorch LSTM).
    ks = jax.random.split(key, 6)
    bound = 1.0 / jnp.sqrt(jnp.float32(hidden_size))
    u = lambda k, shape: jax.random.uniform(k, shape, jnp.float32, -bound, bound)
    return {
        "w_ih": u(ks[0], (4 * hidden_size, INPUT_SIZE)),
        "w_hh": u(ks[1], (4 * hidden_size, hidden_size)),
        "b_ih": u(ks[2], (4 * hidden_size,)),
        "b_hh": u(ks[3], (4 * hidden_size,)),
        "w_dec": u(ks[4], (num_classes, hidden_size)),
        "b_dec": u(ks[5], (num_classes,)),
    }


if __name__ == "__main__":
    B, T, HIDDEN, NUM_CLASSES = 2, 8, 32, 4

    key = jax.random.PRNGKey(0)
    k_x, k_p = jax.random.split(key)
    x = jax.random.normal(k_x, (B, T, INPUT_SIZE), jnp.float32)
    params = init_params(k_p, HIDDEN, NUM_CLASSES)

    out = simple_audio_rnn_forward(x, params,
                                   hidden_size=HIDDEN, num_classes=NUM_CLASSES)
    out = jax.block_until_ready(out)

    ref = reference_forward(x, params)
    assert out.shape == (B, NUM_CLASSES)
    # bf16 recurrence matmul (f32 accumulate) => loosened tolerance vs f32 ref.
    assert jnp.allclose(out, ref, atol=3e-2, rtol=3e-2)
    print("KERNEL_OK")
</pallas_src>

<mosaic_0001>
module attributes {stable_mosaic.version = 11 : i64} {
  func.func @lstm_decoder_kernel(%arg0: i32, %arg1: memref<1x16x34xf32, #tpu.memory_space<vmem>>, %arg2: memref<34x128xf32, #tpu.memory_space<vmem>>, %arg3: memref<32x128xbf16, #tpu.memory_space<vmem>>, %arg4: memref<1x128xf32, #tpu.memory_space<vmem>>, %arg5: memref<32x4xf32, #tpu.memory_space<vmem>>, %arg6: memref<1x4xf32, #tpu.memory_space<vmem>>, %arg7: memref<1x2x4xf32, #tpu.memory_space<vmem>>, %arg8: memref<16x128xf32, #tpu.memory_space<vmem>>) attributes {dimension_semantics = [#tpu.dimension_semantics<parallel>], iteration_bounds = array<i64: 1>, scalar_prefetch = 0 : i64, scratch_operands = 1 : i64, tpu.core_type = #tpu.core_type<tc>, window_params = [{transform_indices = @transform_0, window_bounds = array<i64: 1, 16, 34>}, {pipeline_mode = #tpu.pipeline_mode<synchronous>, transform_indices = @transform_1, window_bounds = array<i64: 34, 128>}, {pipeline_mode = #tpu.pipeline_mode<synchronous>, transform_indices = @transform_2, window_bounds = array<i64: 32, 128>}, {pipeline_mode = #tpu.pipeline_mode<synchronous>, transform_indices = @transform_3, window_bounds = array<i64: 1, 128>}, {pipeline_mode = #tpu.pipeline_mode<synchronous>, transform_indices = @transform_4, window_bounds = array<i64: 32, 4>}, {pipeline_mode = #tpu.pipeline_mode<synchronous>, transform_indices = @transform_5, window_bounds = array<i64: 1, 4>}, {transform_indices = @transform_6, window_bounds = array<i64: 1, 2, 4>}]} {
    %c0 = arith.constant 0 : index
    %c0_0 = arith.constant 0 : index
    %c0_1 = arith.constant 0 : index
    %0 = vector.load %arg1[%c0, %c0_0, %c0_1] : memref<1x16x34xf32, #tpu.memory_space<vmem>>, vector<1x16x34xf32>
    %1 = vector.shape_cast %0 : vector<1x16x34xf32> to vector<16x34xf32>
    %c0_2 = arith.constant 0 : index
    %c0_3 = arith.constant 0 : index
    %2 = vector.load %arg2[%c0_2, %c0_3] : memref<34x128xf32, #tpu.memory_space<vmem>>, vector<34x128xf32>
    %cst = arith.constant dense<0.000000e+00> : vector<16x128xf32>
    %3 = tpu.matmul %1, %2, %cst {dimension_numbers = #tpu.dot_dimension_numbers<[1], [0], [0], [1], [0, 0, 1, 1], [], []>} : vector<16x34xf32>, vector<34x128xf32>, vector<16x128xf32> -> vector<16x128xf32>
    %c0_4 = arith.constant 0 : index
    %c0_5 = arith.constant 0 : index
    %4 = vector.load %arg4[%c0_4, %c0_5] : memref<1x128xf32, #tpu.memory_space<vmem>>, vector<1x128xf32>
    %5 = vector.broadcast %4 : vector<1x128xf32> to vector<16x128xf32>
    %6 = arith.addf %3, %5 : vector<16x128xf32>
    %c0_6 = arith.constant 0 : index
    %c0_7 = arith.constant 0 : index
    %7 = vector.load %arg8[%c0_6, %c0_7] : memref<16x128xf32, #tpu.memory_space<vmem>>, vector<16x128xf32>
    tpu.vector_store %arg8[%c0_6, %c0_7], %6 {strides = array<i32>} : memref<16x128xf32, #tpu.memory_space<vmem>>, vector<16x128xf32>,
    %c0_8 = arith.constant 0 : index
    %c0_9 = arith.constant 0 : index
    %8 = vector.load %arg3[%c0_8, %c0_9] : memref<32x128xbf16, #tpu.memory_space<vmem>>, vector<32x128xbf16>
    %cst_10 = arith.constant 0.000000e+00 : f32
    %9 = vector.broadcast %cst_10 : f32 to vector<2x32xf32>
    %cst_11 = arith.constant 0.000000e+00 : f32
    %10 = vector.broadcast %cst_11 : f32 to vector<2x32xf32>
    %c0_12 = arith.constant 0 : index
    %c0_13 = arith.constant 0 : index
    %11 = vector.load %arg8[%c0_12, %c0_13] : memref<16x128xf32, #tpu.memory_space<vmem>>, vector<2x128xf32>
    %12 = arith.truncf %9 : vector<2x32xf32> to vector<2x32xbf16>
    %cst_14 = arith.constant dense<0.000000e+00> : vector<2x128xf32>
    %13 = tpu.matmul %12, %8, %cst_14 {dimension_numbers = #tpu.dot_dimension_numbers<[1], [0], [0], [1], [0, 0, 1, 1], [], []>} : vector<2x32xbf16>, vector<32x128xbf16>, vector<2x128xf32> -> vector<2x128xf32>
    %14 = arith.addf %11, %13 : vector<2x128xf32>
    %15 = vector.extract_strided_slice %14 {offsets = [0, 0], sizes = [2, 96], strides = [1, 1]} : vector<2x128xf32> to vector<2x96xf32>
    %16 = arith.negf %15 : vector<2x96xf32>
    %17 = math.exp %16 : vector<2x96xf32>
    %cst_15 = arith.constant 1.000000e+00 : f32
    %18 = vector.broadcast %cst_15 : f32 to vector<2x96xf32>
    %19 = arith.addf %18, %17 : vector<2x96xf32>
    %20 = arith.divf %18, %19 : vector<2x96xf32>
    %21 = vector.extract_strided_slice %14 {offsets = [0, 96], sizes = [2, 32], strides = [1, 1]} : vector<2x128xf32> to vector<2x32xf32>
    %22 = math.tanh %21 : vector<2x32xf32>
    %23 = vector.extract_strided_slice %20 {offsets = [0, 32], sizes = [2, 32], strides = [1, 1]} : vector<2x96xf32> to vector<2x32xf32>
    %24 = arith.mulf %23, %10 : vector<2x32xf32>
    %25 = vector.extract_strided_slice %20 {offsets = [0, 0], sizes = [2, 32], strides = [1, 1]} : vector<2x96xf32> to vector<2x32xf32>
    %26 = arith.mulf %25, %22 : vector<2x32xf32>
    %27 = arith.addf %24, %26 : vector<2x32xf32>
    %28 = vector.extract_strided_slice %20 {offsets = [0, 64], sizes = [2, 32], strides = [1, 1]} : vector<2x96xf32> to vector<2x32xf32>
    %29 = math.tanh %27 : vector<2x32xf32>
    %30 = arith.mulf %28, %29 : vector<2x32xf32>
    %c2 = arith.constant 2 : index
    %c0_16 = arith.constant 0 : index
    %31 = vector.load %arg8[%c2, %c0_16] : memref<16x128xf32, #tpu.memory_space<vmem>>, vector<2x128xf32>
    %32 = arith.truncf %30 : vector<2x32xf32> to vector<2x32xbf16>
    %cst_17 = arith.constant dense<0.000000e+00> : vector<2x128xf32>
    %33 = tpu.matmul %32, %8, %cst_17 {dimension_numbers = #tpu.dot_dimension_numbers<[1], [0], [0], [1], [0, 0, 1, 1], [], []>} : vector<2x32xbf16>, vector<32x128xbf16>, vector<2x128xf32> -> vector<2x128xf32>
    %34 = arith.addf %31, %33 : vector<2x128xf32>
    %35 = vector.extract_strided_slice %34 {offsets = [0, 0], sizes = [2, 96], strides = [1, 1]} : vector<2x128xf32> to vector<2x96xf32>
    %36 = arith.negf %35 : vector<2x96xf32>
    %37 = math.exp %36 : vector<2x96xf32>
    %cst_18 = arith.constant 1.000000e+00 : f32
    %38 = vector.broadcast %cst_18 : f32 to vector<2x96xf32>
    %39 = arith.addf %38, %37 : vector<2x96xf32>
    %40 = arith.divf %38, %39 : vector<2x96xf32>
    %41 = vector.extract_strided_slice %34 {offsets = [0, 96], sizes = [2, 32], strides = [1, 1]} : vector<2x128xf32> to vector<2x32xf32>
    %42 = math.tanh %41 : vector<2x32xf32>
    %43 = vector.extract_strided_slice %40 {offsets = [0, 32], sizes = [2, 32], strides = [1, 1]} : vector<2x96xf32> to vector<2x32xf32>
    %44 = arith.mulf %43, %27 : vector<2x32xf32>
    %45 = vector.extract_strided_slice %40 {offsets = [0, 0], sizes = [2, 32], strides = [1, 1]} : vector<2x96xf32> to vector<2x32xf32>
    %46 = arith.mulf %45, %42 : vector<2x32xf32>
    %47 = arith.addf %44, %46 : vector<2x32xf32>
    %48 = vector.extract_strided_slice %40 {offsets = [0, 64], sizes = [2, 32], strides = [1, 1]} : vector<2x96xf32> to vector<2x32xf32>
    %49 = math.tanh %47 : vector<2x32xf32>
    %50 = arith.mulf %48, %49 : vector<2x32xf32>
    %c4 = arith.constant 4 : index
    %c0_19 = arith.constant 0 : index
    %51 = vector.load %arg8[%c4, %c0_19] : memref<16x128xf32, #tpu.memory_space<vmem>>, vector<2x128xf32>
    %52 = arith.truncf %50 : vector<2x32xf32> to vector<2x32xbf16>
    %cst_20 = arith.constant dense<0.000000e+00> : vector<2x128xf32>
    %53 = tpu.matmul %52, %8, %cst_20 {dimension_numbers = #tpu.dot_dimension_numbers<[1], [0], [0], [1], [0, 0, 1, 1], [], []>} : vector<2x32xbf16>, vector<32x128xbf16>, vector<2x128xf32> -> vector<2x128xf32>
    %54 = arith.addf %51, %53 : vector<2x128xf32>
    %55 = vector.extract_strided_slice %54 {offsets = [0, 0], sizes = [2, 96], strides = [1, 1]} : vector<2x128xf32> to vector<2x96xf32>
    %56 = arith.negf %55 : vector<2x96xf32>
    %57 = math.exp %56 : vector<2x96xf32>
    %cst_21 = arith.constant 1.000000e+00 : f32
    %58 = vector.broadcast %cst_21 : f32 to vector<2x96xf32>
    %59 = arith.addf %58, %57 : vector<2x96xf32>
    %60 = arith.divf %58, %59 : vector<2x96xf32>
    %61 = vector.extract_strided_slice %54 {offsets = [0, 96], sizes = [2, 32], strides = [1, 1]} : vector<2x128xf32> to vector<2x32xf32>
    %62 = math.tanh %61 : vector<2x32xf32>
    %63 = vector.extract_strided_slice %60 {offsets = [0, 32], sizes = [2, 32], strides = [1, 1]} : vector<2x96xf32> to vector<2x32xf32>
    %64 = arith.mulf %63, %47 : vector<2x32xf32>
    %65 = vector.extract_strided_slice %60 {offsets = [0, 0], sizes = [2, 32], strides = [1, 1]} : vector<2x96xf32> to vector<2x32xf32>
    %66 = arith.mulf %65, %62 : vector<2x32xf32>
    %67 = arith.addf %64, %66 : vector<2x32xf32>
    %68 = vector.extract_strided_slice %60 {offsets = [0, 64], sizes = [2, 32], strides = [1, 1]} : vector<2x96xf32> to vector<2x32xf32>
    %69 = math.tanh %67 : vector<2x32xf32>
    %70 = arith.mulf %68, %69 : vector<2x32xf32>
    %c6 = arith.constant 6 : index
    %c0_22 = arith.constant 0 : index
    %71 = vector.load %arg8[%c6, %c0_22] : memref<16x128xf32, #tpu.memory_space<vmem>>, vector<2x128xf32>
    %72 = arith.truncf %70 : vector<2x32xf32> to vector<2x32xbf16>
    %cst_23 = arith.constant dense<0.000000e+00> : vector<2x128xf32>
    %73 = tpu.matmul %72, %8, %cst_23 {dimension_numbers = #tpu.dot_dimension_numbers<[1], [0], [0], [1], [0, 0, 1, 1], [], []>} : vector<2x32xbf16>, vector<32x128xbf16>, vector<2x128xf32> -> vector<2x128xf32>
    %74 = arith.addf %71, %73 : vector<2x128xf32>
    %75 = vector.extract_strided_slice %74 {offsets = [0, 0], sizes = [2, 96], strides = [1, 1]} : vector<2x128xf32> to vector<2x96xf32>
    %76 = arith.negf %75 : vector<2x96xf32>
    %77 = math.exp %76 : vector<2x96xf32>
    %cst_24 = arith.constant 1.000000e+00 : f32
    %78 = vector.broadcast %cst_24 : f32 to vector<2x96xf32>
    %79 = arith.addf %78, %77 : vector<2x96xf32>
    %80 = arith.divf %78, %79 : vector<2x96xf32>
    %81 = vector.extract_strided_slice %74 {offsets = [0, 96], sizes = [2, 32], strides = [1, 1]} : vector<2x128xf32> to vector<2x32xf32>
    %82 = math.tanh %81 : vector<2x32xf32>
    %83 = vector.extract_strided_slice %80 {offsets = [0, 32], sizes = [2, 32], strides = [1, 1]} : vector<2x96xf32> to vector<2x32xf32>
    %84 = arith.mulf %83, %67 : vector<2x32xf32>
    %85 = vector.extract_strided_slice %80 {offsets = [0, 0], sizes = [2, 32], strides = [1, 1]} : vector<2x96xf32> to vector<2x32xf32>
    %86 = arith.mulf %85, %82 : vector<2x32xf32>
    %87 = arith.addf %84, %86 : vector<2x32xf32>
    %88 = vector.extract_strided_slice %80 {offsets = [0, 64], sizes = [2, 32], strides = [1, 1]} : vector<2x96xf32> to vector<2x32xf32>
    %89 = math.tanh %87 : vector<2x32xf32>
    %90 = arith.mulf %88, %89 : vector<2x32xf32>
    %c8 = arith.constant 8 : index
    %c0_25 = arith.constant 0 : index
    %91 = vector.load %arg8[%c8, %c0_25] : memref<16x128xf32, #tpu.memory_space<vmem>>, vector<2x128xf32>
    %92 = arith.truncf %90 : vector<2x32xf32> to vector<2x32xbf16>
    %cst_26 = arith.constant dense<0.000000e+00> : vector<2x128xf32>
    %93 = tpu.matmul %92, %8, %cst_26 {dimension_numbers = #tpu.dot_dimension_numbers<[1], [0], [0], [1], [0, 0, 1, 1], [], []>} : vector<2x32xbf16>, vector<32x128xbf16>, vector<2x128xf32> -> vector<2x128xf32>
    %94 = arith.addf %91, %93 : vector<2x128xf32>
    %95 = vector.extract_strided_slice %94 {offsets = [0, 0], sizes = [2, 96], strides = [1, 1]} : vector<2x128xf32> to vector<2x96xf32>
    %96 = arith.negf %95 : vector<2x96xf32>
    %97 = math.exp %96 : vector<2x96xf32>
    %cst_27 = arith.constant 1.000000e+00 : f32
    %98 = vector.broadcast %cst_27 : f32 to vector<2x96xf32>
    %99 = arith.addf %98, %97 : vector<2x96xf32>
    %100 = arith.divf %98, %99 : vector<2x96xf32>
    %101 = vector.extract_strided_slice %94 {offsets = [0, 96], sizes = [2, 32], strides = [1, 1]} : vector<2x128xf32> to vector<2x32xf32>
    %102 = math.tanh %101 : vector<2x32xf32>
    %103 = vector.extract_strided_slice %100 {offsets = [0, 32], sizes = [2, 32], strides = [1, 1]} : vector<2x96xf32> to vector<2x32xf32>
    %104 = arith.mulf %103, %87 : vector<2x32xf32>
    %105 = vector.extract_strided_slice %100 {offsets = [0, 0], sizes = [2, 32], strides = [1, 1]} : vector<2x96xf32> to vector<2x32xf32>
    %106 = arith.mulf %105, %102 : vector<2x32xf32>
    %107 = arith.addf %104, %106 : vector<2x32xf32>
    %108 = vector.extract_strided_slice %100 {offsets = [0, 64], sizes = [2, 32], strides = [1, 1]} : vector<2x96xf32> to vector<2x32xf32>
    %109 = math.tanh %107 : vector<2x32xf32>
    %110 = arith.mulf %108, %109 : vector<2x32xf32>
    %c10 = arith.constant 10 : index
    %c0_28 = arith.constant 0 : index
    %111 = vector.load %arg8[%c10, %c0_28] : memref<16x128xf32, #tpu.memory_space<vmem>>, vector<2x128xf32>
    %112 = arith.truncf %110 : vector<2x32xf32> to vector<2x32xbf16>
    %cst_29 = arith.constant dense<0.000000e+00> : vector<2x128xf32>
    %113 = tpu.matmul %112, %8, %cst_29 {dimension_numbers = #tpu.dot_dimension_numbers<[1], [0], [0], [1], [0, 0, 1, 1], [], []>} : vector<2x32xbf16>, vector<32x128xbf16>, vector<2x128xf32> -> vector<2x128xf32>
    %114 = arith.addf %111, %113 : vector<2x128xf32>
    %115 = vector.extract_strided_slice %114 {offsets = [0, 0], sizes = [2, 96], strides = [1, 1]} : vector<2x128xf32> to vector<2x96xf32>
    %116 = arith.negf %115 : vector<2x96xf32>
    %117 = math.exp %116 : vector<2x96xf32>
    %cst_30 = arith.constant 1.000000e+00 : f32
    %118 = vector.broadcast %cst_30 : f32 to vector<2x96xf32>
    %119 = arith.addf %118, %117 : vector<2x96xf32>
    %120 = arith.divf %118, %119 : vector<2x96xf32>
    %121 = vector.extract_strided_slice %114 {offsets = [0, 96], sizes = [2, 32], strides = [1, 1]} : vector<2x128xf32> to vector<2x32xf32>
    %122 = math.tanh %121 : vector<2x32xf32>
    %123 = vector.extract_strided_slice %120 {offsets = [0, 32], sizes = [2, 32], strides = [1, 1]} : vector<2x96xf32> to vector<2x32xf32>
    %124 = arith.mulf %123, %107 : vector<2x32xf32>
    %125 = vector.extract_strided_slice %120 {offsets = [0, 0], sizes = [2, 32], strides = [1, 1]} : vector<2x96xf32> to vector<2x32xf32>
    %126 = arith.mulf %125, %122 : vector<2x32xf32>
    %127 = arith.addf %124, %126 : vector<2x32xf32>
    %128 = vector.extract_strided_slice %120 {offsets = [0, 64], sizes = [2, 32], strides = [1, 1]} : vector<2x96xf32> to vector<2x32xf32>
    %129 = math.tanh %127 : vector<2x32xf32>
    %130 = arith.mulf %128, %129 : vector<2x32xf32>
    %c12 = arith.constant 12 : index
    %c0_31 = arith.constant 0 : index
    %131 = vector.load %arg8[%c12, %c0_31] : memref<16x128xf32, #tpu.memory_space<vmem>>, vector<2x128xf32>
    %132 = arith.truncf %130 : vector<2x32xf32> to vector<2x32xbf16>
    %cst_32 = arith.constant dense<0.000000e+00> : vector<2x128xf32>
    %133 = tpu.matmul %132, %8, %cst_32 {dimension_numbers = #tpu.dot_dimension_numbers<[1], [0], [0], [1], [0, 0, 1, 1], [], []>} : vector<2x32xbf16>, vector<32x128xbf16>, vector<2x128xf32> -> vector<2x128xf32>
    %134 = arith.addf %131, %133 : vector<2x128xf32>
    %135 = vector.extract_strided_slice %134 {offsets = [0, 0], sizes = [2, 96], strides = [1, 1]} : vector<2x128xf32> to vector<2x96xf32>
    %136 = arith.negf %135 : vector<2x96xf32>
    %137 = math.exp %136 : vector<2x96xf32>
    %cst_33 = arith.constant 1.000000e+00 : f32
    %138 = vector.broadcast %cst_33 : f32 to vector<2x96xf32>
    %139 = arith.addf %138, %137 : vector<2x96xf32>
    %140 = arith.divf %138, %139 : vector<2x96xf32>
    %141 = vector.extract_strided_slice %134 {offsets = [0, 96], sizes = [2, 32], strides = [1, 1]} : vector<2x128xf32> to vector<2x32xf32>
    %142 = math.tanh %141 : vector<2x32xf32>
    %143 = vector.extract_strided_slice %140 {offsets = [0, 32], sizes = [2, 32], strides = [1, 1]} : vector<2x96xf32> to vector<2x32xf32>
    %144 = arith.mulf %143, %127 : vector<2x32xf32>
    %145 = vector.extract_strided_slice %140 {offsets = [0, 0], sizes = [2, 32], strides = [1, 1]} : vector<2x96xf32> to vector<2x32xf32>
    %146 = arith.mulf %145, %142 : vector<2x32xf32>
    %147 = arith.addf %144, %146 : vector<2x32xf32>
    %148 = vector.extract_strided_slice %140 {offsets = [0, 64], sizes = [2, 32], strides = [1, 1]} : vector<2x96xf32> to vector<2x32xf32>
    %149 = math.tanh %147 : vector<2x32xf32>
    %150 = arith.mulf %148, %149 : vector<2x32xf32>
    %c14 = arith.constant 14 : index
    %c0_34 = arith.constant 0 : index
    %151 = vector.load %arg8[%c14, %c0_34] : memref<16x128xf32, #tpu.memory_space<vmem>>, vector<2x128xf32>
    %152 = arith.truncf %150 : vector<2x32xf32> to vector<2x32xbf16>
    %cst_35 = arith.constant dense<0.000000e+00> : vector<2x128xf32>
    %153 = tpu.matmul %152, %8, %cst_35 {dimension_numbers = #tpu.dot_dimension_numbers<[1], [0], [0], [1], [0, 0, 1, 1], [], []>} : vector<2x32xbf16>, vector<32x128xbf16>, vector<2x128xf32> -> vector<2x128xf32>
    %154 = arith.addf %151, %153 : vector<2x128xf32>
    %155 = vector.extract_strided_slice %154 {offsets = [0, 0], sizes = [2, 96], strides = [1, 1]} : vector<2x128xf32> to vector<2x96xf32>
    %156 = arith.negf %155 : vector<2x96xf32>
    %157 = math.exp %156 : vector<2x96xf32>
    %cst_36 = arith.constant 1.000000e+00 : f32
    %158 = vector.broadcast %cst_36 : f32 to vector<2x96xf32>
    %159 = arith.addf %158, %157 : vector<2x96xf32>
    %160 = arith.divf %158, %159 : vector<2x96xf32>
    %161 = vector.extract_strided_slice %154 {offsets = [0, 96], sizes = [2, 32], strides = [1, 1]} : vector<2x128xf32> to vector<2x32xf32>
    %162 = math.tanh %161 : vector<2x32xf32>
    %163 = vector.extract_strided_slice %160 {offsets = [0, 32], sizes = [2, 32], strides = [1, 1]} : vector<2x96xf32> to vector<2x32xf32>
    %164 = arith.mulf %163, %147 : vector<2x32xf32>
    %165 = vector.extract_strided_slice %160 {offsets = [0, 0], sizes = [2, 32], strides = [1, 1]} : vector<2x96xf32> to vector<2x32xf32>
    %166 = arith.mulf %165, %162 : vector<2x32xf32>
    %167 = arith.addf %164, %166 : vector<2x32xf32>
    %168 = vector.extract_strided_slice %160 {offsets = [0, 64], sizes = [2, 32], strides = [1, 1]} : vector<2x96xf32> to vector<2x32xf32>
    %169 = math.tanh %167 : vector<2x32xf32>
    %170 = arith.mulf %168, %169 : vector<2x32xf32>
    %c0_37 = arith.constant 0 : index
    %c0_38 = arith.constant 0 : index
    %171 = vector.load %arg5[%c0_37, %c0_38] : memref<32x4xf32, #tpu.memory_space<vmem>>, vector<32x4xf32>
    %cst_39 = arith.constant dense<0.000000e+00> : vector<2x4xf32>
    %172 = tpu.matmul %170, %171, %cst_39 {dimension_numbers = #tpu.dot_dimension_numbers<[1], [0], [0], [1], [0, 0, 1, 1], [], []>} : vector<2x32xf32>, vector<32x4xf32>, vector<2x4xf32> -> vector<2x4xf32>
    %c0_40 = arith.constant 0 : index
    %c0_41 = arith.constant 0 : index
    %173 = vector.load %arg6[%c0_40, %c0_41] : memref<1x4xf32, #tpu.memory_space<vmem>>, vector<1x4xf32>
    %174 = vector.broadcast %173 : vector<1x4xf32> to vector<2x4xf32>
    %175 = arith.addf %172, %174 : vector<2x4xf32>
    %c0_42 = arith.constant 0 : index
    %c0_43 = arith.constant 0 : index
    %c0_44 = arith.constant 0 : index
    %176 = vector.load %arg7[%c0_42, %c0_43, %c0_44] : memref<1x2x4xf32, #tpu.memory_space<vmem>>, vector<1x2x4xf32>
    %177 = vector.shape_cast %176 : vector<1x2x4xf32> to vector<2x4xf32>
    %178 = vector.shape_cast %175 : vector<2x4xf32> to vector<1x2x4xf32>
    tpu.vector_store %arg7[%c0_42, %c0_43, %c0_44], %178 {strides = array<i32>} : memref<1x2x4xf32, #tpu.memory_space<vmem>>, vector<1x2x4xf32>,
    return
  }
  func.func @transform_0(%arg0: i32) -> (i32, i32, i32) {
    %c0_i32 = arith.constant 0 : i32
    %c0_i32_0 = arith.constant 0 : i32
    %c0_i32_1 = arith.constant 0 : i32
    return %arg0, %c0_i32, %c0_i32_0 : i32, i32, i32
  }
  func.func @transform_1(%arg0: i32) -> (i32, i32) {
    %c0_i32 = arith.constant 0 : i32
    %c0_i32_0 = arith.constant 0 : i32
    %c0_i32_1 = arith.constant 0 : i32
    return %c0_i32, %c0_i32_0 : i32, i32
  }
  func.func @transform_2(%arg0: i32) -> (i32, i32) {
    %c0_i32 = arith.constant 0 : i32
    %c0_i32_0 = arith.constant 0 : i32
    %c0_i32_1 = arith.constant 0 : i32
    return %c0_i32, %c0_i32_0 : i32, i32
  }
  func.func @transform_3(%arg0: i32) -> (i32, i32) {
    %c0_i32 = arith.constant 0 : i32
    %c0_i32_0 = arith.constant 0 : i32
    %c0_i32_1 = arith.constant 0 : i32
    return %c0_i32, %c0_i32_0 : i32, i32
  }
  func.func @transform_4(%arg0: i32) -> (i32, i32) {
    %c0_i32 = arith.constant 0 : i32
    %c0_i32_0 = arith.constant 0 : i32
    %c0_i32_1 = arith.constant 0 : i32
    return %c0_i32, %c0_i32_0 : i32, i32
  }
  func.func @transform_5(%arg0: i32) -> (i32, i32) {
    %c0_i32 = arith.constant 0 : i32
    %c0_i32_0 = arith.constant 0 : i32
    %c0_i32_1 = arith.constant 0 : i32
    return %c0_i32, %c0_i32_0 : i32, i32
  }
  func.func @transform_6(%arg0: i32) -> (i32, i32, i32) {
    %c0_i32 = arith.constant 0 : i32
    %c0_i32_0 = arith.constant 0 : i32
    %c0_i32_1 = arith.constant 0 : i32
    return %arg0, %c0_i32, %c0_i32_0 : i32, i32, i32
  }
}

</mosaic_0001>

<llo_original>
// kernel: tpu_custom_call.1
$region0: #{tpu_custom_call.1}
  #allocation0 [shape = 'u32[]', space=smem, size = 0x4, offset = 0x4, fixed_abs, tag = 'smem constant byte address 0x4 - core index']
  #allocation1 [shape = 'u32[72,128]{1,0:T(1,128)}', space=vmem, size = 0x9000, scoped, tag = 'internal scratch']
  #allocation2 [shape = 'f32[16,128]{1,0:T(8,128)}', space=vmem, size = 0x2000, scoped, tag = 'scratch operand']
  %s0 = inlined_call_operand.vmem [shape: f32[1,16,34], index: 0, kind: input, shape index: {}]
  %s1 = inlined_call_operand.hbm [shape: f32[34,128], index: 1, kind: input, shape index: {}]
  %s2 = inlined_call_operand.vmem [shape: bf16[32,128], index: 2, kind: input, shape index: {}]
  %s3 = inlined_call_operand.vmem [shape: f32[1,128], index: 3, kind: input, shape index: {}]
  %s4 = inlined_call_operand.vmem [shape: f32[32,4], index: 4, kind: input, shape index: {}]
  %s5 = inlined_call_operand.vmem [shape: f32[1,4], index: 5, kind: input, shape index: {}]
  %s6 = inlined_call_operand.hbm [shape: f32[1,2,4], index: 6, kind: output, shape index: {}]
  %s7 = sld [smem:[#allocation0]]
  $region38: #{tpu_custom_call.1} parent=0
    _
  %s9 = ssub.s32 1, %s7
  %s10 = scalar_select 0, %s9, %s7
  $region1: #{tpu_custom_call.1} parent=0
    #allocation3 [shape = 'u8[20480]{0}', space=vmem, size = 0x5000, scoped, tag = 'input window, operand 1, single buffered']
    #allocation4 [shape = 's32[1]{0}', space=sflag, size = 0x4, scoped, tag = 'scoped memory for tpu_custom_call.1']
    #allocation5 [shape = 's32[1]{0}', space=sflag, size = 0x4, scoped, tag = 'scoped memory for tpu_custom_call.1']
    #allocation6 [shape = 'u8[1024]{0}', space=vmem, size = 0x400, scoped, tag = 'output window, operand 0, single buffered']
    %11 = vsyncpa [#allocation4], 0
    %12 = vsyncpa [#allocation5], 0
    // Predicated region
    $region2: #{tpu_custom_call.1} parent=1 // pred_check
      _
    $region3: #{tpu_custom_call.1} parent=1 // pred_check_branch
      %14 = sbr.rel (0) target = $region5
    $region4: #{tpu_custom_call.1} parent=1 // pred_region
      _
    $region5: #{tpu_custom_call.1} parent=1 // pred_fallthru
      _
    // Predicated region
    $region6: #{tpu_custom_call.1} parent=1 // pred_check
      _
    $region7: #{tpu_custom_call.1} parent=1 // pred_check_branch
      %16 = sbr.rel (0) target = $region9
    $region8: #{tpu_custom_call.1} parent=1 // pred_region
      %18 = vsyncadd [#allocation4], 0
      %s19 = sshll.u32 %s1, 4
      %s20 = int_to_ptr.hbm [resolvable:$true] %s19
      %s21 = sshll.u32 [#allocation3], 4
      %s22 = int_to_ptr.vmem [resolvable:$true] %s21
      %27 = dma.hbm_to_vmem [thread:$0]  %s20, 640, %s22, [#allocation4], 128, 128, 8
    $region9: #{tpu_custom_call.1} parent=1 // pred_fallthru
      _
    // Predicated region
    $region10: #{tpu_custom_call.1} parent=1 // pred_check
      _
    $region11: #{tpu_custom_call.1} parent=1 // pred_check_branch
      %29 = sbr.rel (0) target = $region13
    $region12: #{tpu_custom_call.1} parent=1 // pred_region
      _
    $region13: #{tpu_custom_call.1} parent=1 // pred_fallthru
      _
    // Predicated region
    $region14: #{tpu_custom_call.1} parent=1 // pred_check
      _
    $region15: #{tpu_custom_call.1} parent=1 // pred_check_branch
      %31 = sbr.rel (0) target = $region17
    $region16: #{tpu_custom_call.1} parent=1 // pred_region
      _
    $region17: #{tpu_custom_call.1} parent=1 // pred_fallthru
      _
    // Predicated region
    $region18: #{tpu_custom_call.1} parent=1 // pred_check
      _
    $region19: #{tpu_custom_call.1} parent=1 // pred_check_branch
      %33 = sbr.rel (0) target = $region21
    $region20: #{tpu_custom_call.1} parent=1 // pred_region
      _
    $region21: #{tpu_custom_call.1} parent=1 // pred_fallthru
      _
    // Predicated region
    $region22: #{tpu_custom_call.1} parent=1 // pred_check
      _
    $region23: #{tpu_custom_call.1} parent=1 // pred_check_branch
      %35 = sbr.rel (0) target = $region25
    $region24: #{tpu_custom_call.1} parent=1 // pred_region
      _
    $region25: #{tpu_custom_call.1} parent=1 // pred_fallthru
      _
    // Predicated region
    $region26: #{tpu_custom_call.1} parent=1 // pred_check
      _
    $region27: #{tpu_custom_call.1} parent=1 // pred_check_branch
      %37 = sbr.rel (0) target = $region29
    $region28: #{tpu_custom_call.1} parent=1 // pred_region
      %39 = dma.done [#allocation4], 640
    $region29: #{tpu_custom_call.1} parent=1 // pred_fallthru
      _
    %v41 = vld [vmem:[%s0] sm:$0xff]
    %v42 = vld [vmem:[%s0 + $0x8] sm:$0xff]
    %v43 = vld [vmem:[#allocation3] sm:$0xff]
    %v44 = vld [vmem:[#allocation3 + $0x8] sm:$0xff]
    %v45 = vld [vmem:[#allocation3 + $0x10] sm:$0xff]
    %v46 = vld [vmem:[#allocation3 + $0x18] sm:$0xff]
    %v47 = vld [vmem:[#allocation3 + $0x20] sm:$0x3]
    %v48 = vld [vmem:[%s3] sm:$0x1]
    %v50 = vperm.slane %v48, 0
    %vm52 = vcmask 277504
    %v54 = vsel %vm52, %v41, 0
    %v57 = vsel %vm52, %v42, 0
    %vm59 = vcmask 1041408
    %v61 = vsel %vm59, %v47, 0
    %63 = vmatpush.msra.mxu0 0.0
    %64 = vmatpush.msra.mxu0 0.0
    %65 = vmatpush.msra.mxu0 0.0
    %66 = vmatpush.msra.mxu0 0.0
    %67 = vmatpush.msra.mxu0 0.0
    %68 = vmatpush.msra.mxu0 0.0
    %69 = vmatpush.msra.mxu0 0.0
    %70 = vmatpush.msra.mxu0 0.0
    %71 = vmatpush.msra.mxu0 0.0
    %72 = vmatpush.msra.mxu0 0.0
    %73 = vmatpush.msra.mxu0 0.0
    %74 = vmatpush.msra.mxu0 %v61
    %75 = vmatpush.msra.mxu0 %v46
    %76 = vmatpush.msra.mxu0 %v45
    %77 = vmatpush.msra.mxu0 %v44
    %78 = vmatpush.msra.mxu0 %v43
    %79 = vmatmul.f32.gmra.mxu0 %v54
    %v80 = vpop.f32.mrf.mxu0
    %v81 = vadd.f32 %v50, %v80
    %82 = vmatmul.f32.gmra.mxu0 %v57
    %v83 = vpop.f32.mrf.mxu0
    %v84 = vadd.f32 %v50, %v83
    %85 = vdwg.mxu0
    %86 = vst [vmem:[#allocation2] sm:$0xff] %v81
    %87 = vst [vmem:[#allocation2 + $0x8] sm:$0xff] %v84
    %v88 = vld [vmem:[%s2] sm:$0xf]
    %v89 = vld [vmem:[%s2 + $0x4] sm:$0xf]
    %v90 = vld [vmem:[%s2 + $0x8] sm:$0xf]
    %v91 = vld [vmem:[%s2 + $0xc] sm:$0xf]
    %v92 = vld [vmem:[#allocation2] sm:$0x3]
    %v97 = vunpack.c.l.b16 %v88
    %v98 = vunpack.c.l.b16 %v89
    %v99 = vunpack.c.l.b16 %v90
    %v100 = vunpack.c.l.b16 %v91
    %v101 = vpack.c.b16 %v98, %v97
    %v102 = vpack.c.b16 %v100, %v99
    %vm105 = vcmask 261120
    %v107 = vsel %vm105, 0, 0
    %109 = vmatpush.bf16.msra.mxu0 0
    %110 = vmatpush.bf16.msra.mxu0 0
    %111 = vmatpush.bf16.msra.mxu0 0
    %112 = vmatpush.bf16.msra.mxu0 0
    %113 = vmatpush.bf16.msra.mxu0 0
    %114 = vmatpush.bf16.msra.mxu0 0
    %115 = vmatpush.bf16.msra.mxu0 %v102
    %116 = vmatpush.bf16.msra.mxu0 %v101
    %117 = vmatmul.bf16.gmra.mxu0 %v107
    %v118 = vpop.f32.mrf.mxu0
    %v119 = vadd.f32 0.0, %v118
    %v120 = vpop.f32.mrf.mxu0
    %121 = vdwg.mxu0
    %v122 = vadd.f32 %v92, %v119
    %v123 = vxor.u32 %v122, 2147483648
    %v124 = vmul.f32 %v123, 1.442695
    %v125 = vpow.pop %v124
    %v126 = vadd.f32 %v125, 1.0
    %v127 = vrcp.pop %v126
    %v128 = vmul.f32 %v126, %v127
    %v129 = vsub.f32 1.0, %v128
    %v130 = vmul.f32 %v127, %v129
    %v131 = vadd.f32 %v127, %v130
    %vm132 = vweird.f32 %v126
    %vm133 = vweird.f32 %v127
    %vm134 = vmor %vm132, %vm133
    %v135 = vsel %vm134, %v127, %v131
    %v136 = vand.u32 2147483647, %v126
    %vm137 = vcmp.eq.f32.partialorder %v136, 8.507059e+37
    %v138 = vand.u32 %v126, 2147483648
    %v139 = vor.u32 1.1754944e-38, %v138
    %v140 = vsel %vm137, %v139, %v135
    %v141 = vmul.f32 1.0, %v140
    %v142 = vtanh.pop %v122
    %v143 = vmul.f32 %v141, 0.0
    %145 = vrot.lane.b32.xlu0 %v142, 32
    %v146 = vpop.permute.xlu0 %145
    %v148 = vmul.f32 %v141, %v146
    %150 = vrot.lane.b32.xlu0 %v148, 32
    %v151 = vpop.permute.xlu0 %150
    %v153 = vadd.f32 %v143, %v151
    %v154 = vtanh.pop %v153
    %156 = vrot.lane.b32.xlu0 %v154, 32
    %v157 = vpop.permute.xlu0 %156
    %v159 = vmul.f32 %v141, %v157
    %v160 = vld [vmem:[#allocation2 + $0x2] sm:$0x3]
    %v161 = vpack.c.bf16 %v159, %v159
    %163 = vrot.lane.b32.xlu0 %v161, 64
    %v164 = vpop.permute.xlu0 %163
    %v166 = vsel %vm105, %v164, 0
    %168 = vmatpush.bf16.msra.mxu0 0
    %169 = vmatpush.bf16.msra.mxu0 0
    %170 = vmatpush.bf16.msra.mxu0 0
    %171 = vmatpush.bf16.msra.mxu0 0
    %172 = vmatpush.bf16.msra.mxu0 0
    %173 = vmatpush.bf16.msra.mxu0 0
    %174 = vmatpush.bf16.msra.mxu0 %v102
    %175 = vmatpush.bf16.msra.mxu0 %v101
    %176 = vmatmul.bf16.gmra.mxu0 %v166
    %v177 = vpop.f32.mrf.mxu0
    %v178 = vadd.f32 0.0, %v177
    %v179 = vpop.f32.mrf.mxu0
    %180 = vdwg.mxu0
    %v181 = vadd.f32 %v160, %v178
    %v182 = vxor.u32 %v181, 2147483648
    %v183 = vmul.f32 %v182, 1.442695
    %v184 = vpow.pop %v183
    %v185 = vadd.f32 %v184, 1.0
    %v186 = vrcp.pop %v185
    %v187 = vmul.f32 %v185, %v186
    %v188 = vsub.f32 1.0, %v187
    %v189 = vmul.f32 %v186, %v188
    %v190 = vadd.f32 %v186, %v189
    %vm191 = vweird.f32 %v185
    %vm192 = vweird.f32 %v186
    %vm193 = vmor %vm191, %vm192
    %v194 = vsel %vm193, %v186, %v190
    %v195 = vand.u32 2147483647, %v185
    %vm196 = vcmp.eq.f32.partialorder %v195, 8.507059e+37
    %v197 = vand.u32 %v185, 2147483648
    %v198 = vor.u32 1.1754944e-38, %v197
    %v199 = vsel %vm196, %v198, %v194
    %v200 = vmul.f32 1.0, %v199
    %v201 = vtanh.pop %v181
    %v202 = vmul.f32 %v200, %v153
    %204 = vrot.lane.b32.xlu0 %v201, 32
    %v205 = vpop.permute.xlu0 %204
    %v207 = vmul.f32 %v200, %v205
    %209 = vrot.lane.b32.xlu0 %v207, 32
    %v210 = vpop.permute.xlu0 %209
    %v212 = vadd.f32 %v202, %v210
    %v213 = vtanh.pop %v212
    %215 = vrot.lane.b32.xlu0 %v213, 32
    %v216 = vpop.permute.xlu0 %215
    %v218 = vmul.f32 %v200, %v216
    %v219 = vld [vmem:[#allocation2 + $0x4] sm:$0x3]
    %v220 = vpack.c.bf16 %v218, %v218
    %222 = vrot.lane.b32.xlu0 %v220, 64
    %v223 = vpop.permute.xlu0 %222
    %v225 = vsel %vm105, %v223, 0
    %227 = vmatpush.bf16.msra.mxu0 0
    %228 = vmatpush.bf16.msra.mxu0 0
    %229 = vmatpush.bf16.msra.mxu0 0
    %230 = vmatpush.bf16.msra.mxu0 0
    %231 = vmatpush.bf16.msra.mxu0 0
    %232 = vmatpush.bf16.msra.mxu0 0
    %233 = vmatpush.bf16.msra.mxu0 %v102
    %234 = vmatpush.bf16.msra.mxu0 %v101
    %235 = vmatmul.bf16.gmra.mxu0 %v225
    %v236 = vpop.f32.mrf.mxu0
    %v237 = vadd.f32 0.0, %v236
    %v238 = vpop.f32.mrf.mxu0
    %239 = vdwg.mxu0
    %v240 = vadd.f32 %v219, %v237
    %v241 = vxor.u32 %v240, 2147483648
    %v242 = vmul.f32 %v241, 1.442695
    %v243 = vpow.pop %v242
    %v244 = vadd.f32 %v243, 1.0
    %v245 = vrcp.pop %v244
    %v246 = vmul.f32 %v244, %v245
    %v247 = vsub.f32 1.0, %v246
    %v248 = vmul.f32 %v245, %v247
    %v249 = vadd.f32 %v245, %v248
    %vm250 = vweird.f32 %v244
    %vm251 = vweird.f32 %v245
    %vm252 = vmor %vm250, %vm251
    %v253 = vsel %vm252, %v245, %v249
    %v254 = vand.u32 2147483647, %v244
    %vm255 = vcmp.eq.f32.partialorder %v254, 8.507059e+37
    %v256 = vand.u32 %v244, 2147483648
    %v257 = vor.u32 1.1754944e-38, %v256
    %v258 = vsel %vm255, %v257, %v253
    %v259 = vmul.f32 1.0, %v258
    %v260 = vtanh.pop %v240
    %v261 = vmul.f32 %v259, %v212
    %263 = vrot.lane.b32.xlu0 %v260, 32
    %v264 = vpop.permute.xlu0 %263
    %v266 = vmul.f32 %v259, %v264
    %268 = vrot.lane.b32.xlu0 %v266, 32
    %v269 = vpop.permute.xlu0 %268
    %v271 = vadd.f32 %v261, %v269
    %v272 = vtanh.pop %v271
    %274 = vrot.lane.b32.xlu0 %v272, 32
    %v275 = vpop.permute.xlu0 %274
    %v277 = vmul.f32 %v259, %v275
    %v278 = vld [vmem:[#allocation2 + $0x6] sm:$0x3]
    %v279 = vpack.c.bf16 %v277, %v277
    %281 = vrot.lane.b32.xlu0 %v279, 64
    %v282 = vpop.permute.xlu0 %281
    %v284 = vsel %vm105, %v282, 0
    %286 = vmatpush.bf16.msra.mxu0 0
    %287 = vmatpush.bf16.msra.mxu0 0
    %288 = vmatpush.bf16.msra.mxu0 0
    %289 = vmatpush.bf16.msra.mxu0 0
    %290 = vmatpush.bf16.msra.mxu0 0
    %291 = vmatpush.bf16.msra.mxu0 0
    %292 = vmatpush.bf16.msra.mxu0 %v102
    %293 = vmatpush.bf16.msra.mxu0 %v101
    %294 = vmatmul.bf16.gmra.mxu0 %v284
    %v295 = vpop.f32.mrf.mxu0
    %v296 = vadd.f32 0.0, %v295
    %v297 = vpop.f32.mrf.mxu0
    %298 = vdwg.mxu0
    %v299 = vadd.f32 %v278, %v296
    %v300 = vxor.u32 %v299, 2147483648
    %v301 = vmul.f32 %v300, 1.442695
    %v302 = vpow.pop %v301
    %v303 = vadd.f32 %v302, 1.0
    %v304 = vrcp.pop %v303
    %v305 = vmul.f32 %v303, %v304
    %v306 = vsub.f32 1.0, %v305
    %v307 = vmul.f32 %v304, %v306
    %v308 = vadd.f32 %v304, %v307
    %vm309 = vweird.f32 %v303
    %vm310 = vweird.f32 %v304
    %vm311 = vmor %vm309, %vm310
    %v312 = vsel %vm311, %v304, %v308
    %v313 = vand.u32 2147483647, %v303
    %vm314 = vcmp.eq.f32.partialorder %v313, 8.507059e+37
    %v315 = vand.u32 %v303, 2147483648
    %v316 = vor.u32 1.1754944e-38, %v315
    %v317 = vsel %vm314, %v316, %v312
    %v318 = vmul.f32 1.0, %v317
    %v319 = vtanh.pop %v299
    %v320 = vmul.f32 %v318, %v271
    %322 = vrot.lane.b32.xlu0 %v319, 32
    %v323 = vpop.permute.xlu0 %322
    %v325 = vmul.f32 %v318, %v323
    %327 = vrot.lane.b32.xlu0 %v325, 32
    %v328 = vpop.permute.xlu0 %327
    %v330 = vadd.f32 %v320, %v328
    %v331 = vtanh.pop %v330
    %333 = vrot.lane.b32.xlu0 %v331, 32
    %v334 = vpop.permute.xlu0 %333
    %v336 = vmul.f32 %v318, %v334
    %v337 = vld [vmem:[#allocation2 + $0x8] sm:$0x3]
    %v338 = vpack.c.bf16 %v336, %v336
    %340 = vrot.lane.b32.xlu0 %v338, 64
    %v341 = vpop.permute.xlu0 %340
    %v343 = vsel %vm105, %v341, 0
    %345 = vmatpush.bf16.msra.mxu0 0
    %346 = vmatpush.bf16.msra.mxu0 0
    %347 = vmatpush.bf16.msra.mxu0 0
    %348 = vmatpush.bf16.msra.mxu0 0
    %349 = vmatpush.bf16.msra.mxu0 0
    %350 = vmatpush.bf16.msra.mxu0 0
    %351 = vmatpush.bf16.msra.mxu0 %v102
    %352 = vmatpush.bf16.msra.mxu0 %v101
    %353 = vmatmul.bf16.gmra.mxu0 %v343
    %v354 = vpop.f32.mrf.mxu0
    %v355 = vadd.f32 0.0, %v354
    %v356 = vpop.f32.mrf.mxu0
    %357 = vdwg.mxu0
    %v358 = vadd.f32 %v337, %v355
    %v359 = vxor.u32 %v358, 2147483648
    %v360 = vmul.f32 %v359, 1.442695
    %v361 = vpow.pop %v360
    %v362 = vadd.f32 %v361, 1.0
    %v363 = vrcp.pop %v362
    %v364 = vmul.f32 %v362, %v363
    %v365 = vsub.f32 1.0, %v364
    %v366 = vmul.f32 %v363, %v365
    %v367 = vadd.f32 %v363, %v366
    %vm368 = vweird.f32 %v362
    %vm369 = vweird.f32 %v363
    %vm370 = vmor %vm368, %vm369
    %v371 = vsel %vm370, %v363, %v367
    %v372 = vand.u32 2147483647, %v362
    %vm373 = vcmp.eq.f32.partialorder %v372, 8.507059e+37
    %v374 = vand.u32 %v362, 2147483648
    %v375 = vor.u32 1.1754944e-38, %v374
    %v376 = vsel %vm373, %v375, %v371
    %v377 = vmul.f32 1.0, %v376
    %v378 = vtanh.pop %v358
    %v379 = vmul.f32 %v377, %v330
    %381 = vrot.lane.b32.xlu0 %v378, 32
    %v382 = vpop.permute.xlu0 %381
    %v384 = vmul.f32 %v377, %v382
    %386 = vrot.lane.b32.xlu0 %v384, 32
    %v387 = vpop.permute.xlu0 %386
    %v389 = vadd.f32 %v379, %v387
    %v390 = vtanh.pop %v389
    %392 = vrot.lane.b32.xlu0 %v390, 32
    %v393 = vpop.permute.xlu0 %392
    %v395 = vmul.f32 %v377, %v393
    %v396 = vld [vmem:[#allocation2 + $0xa] sm:$0x3]
    %v397 = vpack.c.bf16 %v395, %v395
    %399 = vrot.lane.b32.xlu0 %v397, 64
    %v400 = vpop.permute.xlu0 %399
    %v402 = vsel %vm105, %v400, 0
    %404 = vmatpush.bf16.msra.mxu0 0
    %405 = vmatpush.bf16.msra.mxu0 0
    %406 = vmatpush.bf16.msra.mxu0 0
    %407 = vmatpush.bf16.msra.mxu0 0
    %408 = vmatpush.bf16.msra.mxu0 0
    %409 = vmatpush.bf16.msra.mxu0 0
    %410 = vmatpush.bf16.msra.mxu0 %v102
    %411 = vmatpush.bf16.msra.mxu0 %v101
    %412 = vmatmul.bf16.gmra.mxu0 %v402
    %v413 = vpop.f32.mrf.mxu0
    %v414 = vadd.f32 0.0, %v413
    %v415 = vpop.f32.mrf.mxu0
    %416 = vdwg.mxu0
    %v417 = vadd.f32 %v396, %v414
    %v418 = vxor.u32 %v417, 2147483648
    %v419 = vmul.f32 %v418, 1.442695
    %v420 = vpow.pop %v419
    %v421 = vadd.f32 %v420, 1.0
    %v422 = vrcp.pop %v421
    %v423 = vmul.f32 %v421, %v422
    %v424 = vsub.f32 1.0, %v423
    %v425 = vmul.f32 %v422, %v424
    %v426 = vadd.f32 %v422, %v425
    %vm427 = vweird.f32 %v421
    %vm428 = vweird.f32 %v422
    %vm429 = vmor %vm427, %vm428
    %v430 = vsel %vm429, %v422, %v426
    %v431 = vand.u32 2147483647, %v421
    %vm432 = vcmp.eq.f32.partialorder %v431, 8.507059e+37
    %v433 = vand.u32 %v421, 2147483648
    %v434 = vor.u32 1.1754944e-38, %v433
    %v435 = vsel %vm432, %v434, %v430
    %v436 = vmul.f32 1.0, %v435
    %v437 = vtanh.pop %v417
    %v438 = vmul.f32 %v436, %v389
    %440 = vrot.lane.b32.xlu0 %v437, 32
    %v441 = vpop.permute.xlu0 %440
    %v443 = vmul.f32 %v436, %v441
    %445 = vrot.lane.b32.xlu0 %v443, 32
    %v446 = vpop.permute.xlu0 %445
    %v448 = vadd.f32 %v438, %v446
    %v449 = vtanh.pop %v448
    %451 = vrot.lane.b32.xlu0 %v449, 32
    %v452 = vpop.permute.xlu0 %451
    %v454 = vmul.f32 %v436, %v452
    %v455 = vld [vmem:[#allocation2 + $0xc] sm:$0x3]
    %v456 = vpack.c.bf16 %v454, %v454
    %458 = vrot.lane.b32.xlu0 %v456, 64
    %v459 = vpop.permute.xlu0 %458
    %v461 = vsel %vm105, %v459, 0
    %463 = vmatpush.bf16.msra.mxu0 0
    %464 = vmatpush.bf16.msra.mxu0 0
    %465 = vmatpush.bf16.msra.mxu0 0
    %466 = vmatpush.bf16.msra.mxu0 0
    %467 = vmatpush.bf16.msra.mxu0 0
    %468 = vmatpush.bf16.msra.mxu0 0
    %469 = vmatpush.bf16.msra.mxu0 %v102
    %470 = vmatpush.bf16.msra.mxu0 %v101
    %471 = vmatmul.bf16.gmra.mxu0 %v461
    %v472 = vpop.f32.mrf.mxu0
    %v473 = vadd.f32 0.0, %v472
    %v474 = vpop.f32.mrf.mxu0
    %475 = vdwg.mxu0
    %v476 = vadd.f32 %v455, %v473
    %v477 = vxor.u32 %v476, 2147483648
    %v478 = vmul.f32 %v477, 1.442695
    %v479 = vpow.pop %v478
    %v480 = vadd.f32 %v479, 1.0
    %v481 = vrcp.pop %v480
    %v482 = vmul.f32 %v480, %v481
    %v483 = vsub.f32 1.0, %v482
    %v484 = vmul.f32 %v481, %v483
    %v485 = vadd.f32 %v481, %v484
    %vm486 = vweird.f32 %v480
    %vm487 = vweird.f32 %v481
    %vm488 = vmor %vm486, %vm487
    %v489 = vsel %vm488, %v481, %v485
    %v490 = vand.u32 2147483647, %v480
    %vm491 = vcmp.eq.f32.partialorder %v490, 8.507059e+37
    %v492 = vand.u32 %v480, 2147483648
    %v493 = vor.u32 1.1754944e-38, %v492
    %v494 = vsel %vm491, %v493, %v489
    %v495 = vmul.f32 1.0, %v494
    %v496 = vtanh.pop %v476
    %v497 = vmul.f32 %v495, %v448
    %499 = vrot.lane.b32.xlu0 %v496, 32
    %v500 = vpop.permute.xlu0 %499
    %v502 = vmul.f32 %v495, %v500
    %504 = vrot.lane.b32.xlu0 %v502, 32
    %v505 = vpop.permute.xlu0 %504
    %v507 = vadd.f32 %v497, %v505
    %v508 = vtanh.pop %v507
    %510 = vrot.lane.b32.xlu0 %v508, 32
    %v511 = vpop.permute.xlu0 %510
    %v513 = vmul.f32 %v495, %v511
    %v514 = vld [vmem:[#allocation2 + $0xe] sm:$0x3]
    %v515 = vpack.c.bf16 %v513, %v513
    %517 = vrot.lane.b32.xlu0 %v515, 64
    %v518 = vpop.permute.xlu0 %517
    %v520 = vsel %vm105, %v518, 0
    %522 = vmatpush.bf16.msra.mxu0 0
    %523 = vmatpush.bf16.msra.mxu0 0
    %524 = vmatpush.bf16.msra.mxu0 0
    %525 = vmatpush.bf16.msra.mxu0 0
    %526 = vmatpush.bf16.msra.mxu0 0
    %527 = vmatpush.bf16.msra.mxu0 0
    %528 = vmatpush.bf16.msra.mxu0 %v102
    %529 = vmatpush.bf16.msra.mxu0 %v101
    %530 = vmatmul.bf16.gmra.mxu0 %v520
    %v531 = vpop.f32.mrf.mxu0
    %v532 = vadd.f32 0.0, %v531
    %v533 = vpop.f32.mrf.mxu0
    %534 = vdwg.mxu0
    %v535 = vadd.f32 %v514, %v532
    %v536 = vxor.u32 %v535, 2147483648
    %v537 = vmul.f32 %v536, 1.442695
    %v538 = vpow.pop %v537
    %v539 = vadd.f32 %v538, 1.0
    %v540 = vrcp.pop %v539
    %v541 = vmul.f32 %v539, %v540
    %v542 = vsub.f32 1.0, %v541
    %v543 = vmul.f32 %v540, %v542
    %v544 = vadd.f32 %v540, %v543
    %vm545 = vweird.f32 %v539
    %vm546 = vweird.f32 %v540
    %vm547 = vmor %vm545, %vm546
    %v548 = vsel %vm547, %v540, %v544
    %v549 = vand.u32 2147483647, %v539
    %vm550 = vcmp.eq.f32.partialorder %v549, 8.507059e+37
    %v551 = vand.u32 %v539, 2147483648
    %v552 = vor.u32 1.1754944e-38, %v551
    %v553 = vsel %vm550, %v552, %v548
    %v554 = vmul.f32 1.0, %v553
    %v555 = vtanh.pop %v535
    %v556 = vmul.f32 %v554, %v507
    %558 = vrot.lane.b32.xlu0 %v555, 32
    %v559 = vpop.permute.xlu0 %558
    %v561 = vmul.f32 %v554, %v559
    %563 = vrot.lane.b32.xlu0 %v561, 32
    %v564 = vpop.permute.xlu0 %563
    %v566 = vadd.f32 %v556, %v564
    %v567 = vtanh.pop %v566
    %569 = vrot.lane.b32.xlu0 %v567, 32
    %v570 = vpop.permute.xlu0 %569
    %v572 = vmul.f32 %v554, %v570
    %v573 = vld [vmem:[%s4] sm:$0xff]
    %v574 = vld [vmem:[%s4 + $0x8] sm:$0xff]
    %v575 = vld [vmem:[%s4 + $0x10] sm:$0xff]
    %v576 = vld [vmem:[%s4 + $0x18] sm:$0xff]
    %v577 = vld [vmem:[%s5] sm:$0x1]
    %v579 = vperm.slane %v577, 0
    %582 = vrot.lane.b32.xlu0 %v572, 64
    %v583 = vpop.permute.xlu0 %582
    %v584 = vsel %vm105, %v583, 0
    %586 = vmatpush.msra.mxu0 0.0
    %587 = vmatpush.msra.mxu0 0.0
    %588 = vmatpush.msra.mxu0 0.0
    %589 = vmatpush.msra.mxu0 0.0
    %590 = vmatpush.msra.mxu0 0.0
    %591 = vmatpush.msra.mxu0 0.0
    %592 = vmatpush.msra.mxu0 0.0
    %593 = vmatpush.msra.mxu0 0.0
    %594 = vmatpush.msra.mxu0 0.0
    %595 = vmatpush.msra.mxu0 0.0
    %596 = vmatpush.msra.mxu0 0.0
    %597 = vmatpush.msra.mxu0 0.0
    %598 = vmatpush.msra.mxu0 %v576
    %599 = vmatpush.msra.mxu0 %v575
    %600 = vmatpush.msra.mxu0 %v574
    %601 = vmatpush.msra.mxu0 %v573
    %602 = vmatmul.f32.gmra.mxu0 %v584
    %v603 = vpop.f32.mrf.mxu0
    %v604 = vadd.f32 %v579, %v603
    %605 = vdwg.mxu0
    %vm606 = vcmask 25600
    %607 = vst.msk [vmem:[#allocation6] sm:$0x3] %vm606, %v604
    // Predicated region
    $region30: #{tpu_custom_call.1} parent=1 // pred_check
      _
    $region31: #{tpu_custom_call.1} parent=1 // pred_check_branch
      %609 = sbr.rel (0) target = $region33
    $region32: #{tpu_custom_call.1} parent=1 // pred_region
      %611 = vsyncadd [#allocation5], 0
      %s613 = sshll.u32 [#allocation6], 4
      %s614 = int_to_ptr.vmem [resolvable:$true] %s613
      %s615 = sshll.u32 %s6, 4
      %s616 = int_to_ptr.hbm [resolvable:$true] %s615
      %618 = dma.vmem_to_hbm [thread:$0]  %s614, 32, %s616, [#allocation5]
    $region33: #{tpu_custom_call.1} parent=1 // pred_fallthru
      _
    // Predicated region
    $region34: #{tpu_custom_call.1} parent=1 // pred_check
      _
    $region35: #{tpu_custom_call.1} parent=1 // pred_check_branch
      %620 = sbr.rel (0) target = $region37
    $region36: #{tpu_custom_call.1} parent=1 // pred_region
      %622 = dma.done [#allocation5], 32
    $region37: #{tpu_custom_call.1} parent=1 // pred_fallthru
      _
    %623 = vsyncpa [#allocation4], 1
    %624 = vsyncpa [#allocation5], 1

</llo_original>
